<compile_context>
chip_gen: v5e
topology: v5e:2x2
jax: 0.10.0
libtpu: 0.0.40
codegen_flags: <defaults>
</compile_context>

<pallas_src>
import functools

import jax
import jax.numpy as jnp
from jax.experimental import pallas as pl
from jax.experimental.pallas import tpu as pltpu


def _round_up(x, m):
    return (x + m - 1) // m * m


def _cdiv(a, b):
    return (a + b - 1) // b


def _vmem_capacity_bytes():
    """Generation-aware VMEM capacity; conservative v7x per-TC fallback."""
    try:
        return int(pltpu.get_tpu_info().vmem_capacity_bytes)
    except Exception:
        return 64 << 20


def _decoder_kernel(z_ref, w1_ref, b1_ref, w2_ref, b2_ref, out_ref):
    # hidden = relu(z @ W1 + b1): bf16 MXU operands, f32 accumulation,
    # bias-add / ReLU in f32 on the VPU.
    z = z_ref[...].astype(jnp.bfloat16)
    h = jnp.dot(z, w1_ref[...], preferred_element_type=jnp.float32)
    h = jnp.maximum(h + b1_ref[...], 0.0)
    # predicted = hidden @ W2 + b2
    y = jnp.dot(h.astype(jnp.bfloat16), w2_ref[...],
                preferred_element_type=jnp.float32)
    y = y + b2_ref[...]
    out_ref[...] = y.astype(out_ref.dtype)


def prepare_decoder_params(w1, b1, w2, b2):
    """One-time (hoisted) lane-dense padding + bf16 cast of the weights.

    w1: [z_dim, hidden], b1: [1, hidden] (or [hidden]),
    w2: [hidden, out],   b2: [1, out]    (or [out]).
    Padded hidden/out columns are exact zeros: 0-rows/cols contribute 0,
    relu(0 + 0) = 0, and padded output columns are sliced off.
    """
    z_dim, hidden_dim = w1.shape
    out_dim = w2.shape[1]
    Hp = _round_up(hidden_dim, 128)
    Op = _round_up(out_dim, 128)
    w1p = jnp.pad(w1, ((0, 0), (0, Hp - hidden_dim))).astype(jnp.bfloat16)
    b1p = jnp.pad(jnp.reshape(b1, (1, -1)),
                  ((0, 0), (0, Hp - hidden_dim))).astype(jnp.float32)
    w2p = jnp.pad(w2, ((0, Hp - hidden_dim), (0, Op - out_dim))).astype(jnp.bfloat16)
    b2p = jnp.pad(jnp.reshape(b2, (1, -1)),
                  ((0, 0), (0, Op - out_dim))).astype(jnp.float32)
    return w1p, b1p, w2p, b2p


@functools.partial(jax.jit, static_argnames=("out_dim", "block_b"))
def decoder_forward(z, w1p, b1p, w2p, b2p, *, out_dim, block_b=512):
    """Fused two-layer MLP decoder on prepared (padded, bf16) params."""
    B, z_dim = z.shape
    Hp = w1p.shape[1]
    Op = w2p.shape[1]

    # Batch tile: multiple of 8 sublanes, capped at block_b. No HBM padding of
    # the batch dim; the ragged last block's OOB output rows are masked.
    TB = min(block_b, _round_up(B, 8))
    nb = _cdiv(B, TB)

    # Output-column tile: keep W2 fully resident when small; split columns
    # when the batch grid is length-1 (so the grid still has >=2 parallel
    # tiles for v7x's two TensorCores) or when the W2 block would be large.
    n_lane = Op // 128
    if nb == 1 and n_lane >= 2:
        TN = 128 * _cdiv(n_lane, 2)
    else:
        TN = Op
    w2_block_cap = 8 << 20  # bytes per resident bf16 W2 column block
    while TN > 128 and Hp * TN * 2 > w2_block_cap:
        TN = 128 * _cdiv(TN // 128, 2)
    nc = _cdiv(Op, TN)

    # Accurate VMEM budget: double-buffered streamed tiles, resident (but
    # still double-buffered) weights/biases, f32/bf16 compute temporaries.
    est = (
        2 * TB * z_dim * 4      # z tiles (f32, double-buffered)
        + 2 * TB * TN * 4       # out tiles (f32, double-buffered)
        + 2 * z_dim * Hp * 2    # w1 (bf16)
        + 2 * Hp * TN * 2       # w2 column block (bf16)
        + 2 * 8 * Hp * 4        # b1 (sublane-padded)
        + 2 * 8 * TN * 4        # b2 (sublane-padded)
        + TB * Hp * 6           # hidden f32 + bf16 copy
        + TB * TN * 4           # y f32 before cast/store
        + TB * z_dim * 2        # z bf16 copy
    )
    cap = _vmem_capacity_bytes()
    vmem_limit = int(min(max(est + (8 << 20), 32 << 20), int(cap * 0.85)))

    flops = 2 * B * (z_dim * Hp + Hp * Op)
    bytes_accessed = int(z.size * 4 + w1p.size * 2 + w2p.size * 2
                         + b1p.size * 4 + b2p.size * 4 + B * Op * 4)

    out_padded = pl.pallas_call(
        _decoder_kernel,
        out_shape=jax.ShapeDtypeStruct((B, Op), z.dtype),
        grid_spec=pltpu.PrefetchScalarGridSpec(
            num_scalar_prefetch=0,
            grid=(nb, nc),
            in_specs=[
                pl.BlockSpec((TB, z_dim), lambda i, j: (i, 0)),  # z (streamed)
                pl.BlockSpec((z_dim, Hp), lambda i, j: (0, 0)),  # w1 (resident)
                pl.BlockSpec((1, Hp),     lambda i, j: (0, 0)),  # b1 (resident)
                pl.BlockSpec((Hp, TN),    lambda i, j: (0, j)),  # w2 col block
                pl.BlockSpec((1, TN),     lambda i, j: (0, j)),  # b2 col block
            ],
            out_specs=pl.BlockSpec((TB, TN), lambda i, j: (i, j)),
        ),
        compiler_params=pltpu.CompilerParams(
            dimension_semantics=("parallel", "parallel"),
            vmem_limit_bytes=vmem_limit,
        ),
        cost_estimate=pl.CostEstimate(flops=flops, transcendentals=0,
                                      bytes_accessed=bytes_accessed),
    )(z, w1p, b1p, w2p, b2p)

    if out_dim == Op:
        return out_padded
    return out_padded[:, :out_dim]


def decoder_forward_auto(z, w1, b1, w2, b2, *, min_flops=1 << 22):
    """Dispatch helper: tiny problems go to a plain fused XLA matmul, where
    pad/launch overhead would dominate a 128-padded Pallas call.
    (In real use, cache prepare_decoder_params once instead of per call.)"""
    B, z_dim = z.shape
    hidden_dim, out_dim = w2.shape
    flops = 2 * B * (z_dim * hidden_dim + hidden_dim * out_dim)
    if flops < min_flops:
        return jnp.maximum(z @ w1 + b1, 0.0) @ w2 + b2
    params = prepare_decoder_params(w1, b1, w2, b2)
    return decoder_forward(z, *params, out_dim=out_dim)


def init_decoder_params(key, z_dim, hidden_dim, output_dim, dtype=jnp.float32):
    """Deterministic init mimicking nn.Linear's default U(-1/sqrt(fan_in), +)."""
    k1, k2, k3, k4 = jax.random.split(key, 4)
    lim1 = 1.0 / jnp.sqrt(z_dim)
    lim2 = 1.0 / jnp.sqrt(hidden_dim)
    w1 = jax.random.uniform(k1, (z_dim, hidden_dim), dtype, -lim1, lim1)
    b1 = jax.random.uniform(k2, (1, hidden_dim), dtype, -lim1, lim1)
    w2 = jax.random.uniform(k3, (hidden_dim, output_dim), dtype, -lim2, lim2)
    b2 = jax.random.uniform(k4, (1, output_dim), dtype, -lim2, lim2)
    return w1, b1, w2, b2


if __name__ == "__main__":
    # Small shapes consistent with the module's forward (z: [batch, z_dim]).
    B, Z_DIM, HIDDEN_DIM, OUTPUT_DIM = 8, 8, 32, 16

    key = jax.random.PRNGKey(0)
    k_z, k_p = jax.random.split(key)
    z = jax.random.normal(k_z, (B, Z_DIM), jnp.float32)
    w1, b1, w2, b2 = init_decoder_params(k_p, Z_DIM, HIDDEN_DIM, OUTPUT_DIM)

    # Hoisted (one-time) weight padding / bf16 cast, then the Pallas forward.
    params = prepare_decoder_params(w1, b1, w2, b2)
    predicted = decoder_forward(z, *params, out_dim=OUTPUT_DIM)
    predicted = jax.block_until_ready(predicted)

    # Pure-JAX reference check of forward semantics (bf16 MXU operands ->
    # relaxed tolerance vs. the full-f32 reference).
    ref = jnp.maximum(z @ w1 + b1, 0.0) @ w2 + b2
    assert predicted.shape == (B, OUTPUT_DIM)
    assert jnp.allclose(predicted, ref, atol=3e-2, rtol=3e-2)

    print("KERNEL_OK")
</pallas_src>

<mosaic_0001>
module attributes {stable_mosaic.version = 11 : i64} {
  func.func @_decoder_kernel(%arg0: i32, %arg1: i32, %arg2: memref<8x8xf32, #tpu.memory_space<vmem>>, %arg3: memref<8x128xbf16, #tpu.memory_space<vmem>>, %arg4: memref<1x128xf32, #tpu.memory_space<vmem>>, %arg5: memref<128x128xbf16, #tpu.memory_space<vmem>>, %arg6: memref<1x128xf32, #tpu.memory_space<vmem>>, %arg7: memref<8x128xf32, #tpu.memory_space<vmem>>) attributes {dimension_semantics = [#tpu.dimension_semantics<parallel>, #tpu.dimension_semantics<parallel>], iteration_bounds = array<i64: 1, 1>, scalar_prefetch = 0 : i64, scratch_operands = 0 : i64, tpu.core_type = #tpu.core_type<tc>, window_params = [{transform_indices = @transform_0, window_bounds = array<i64: 8, 8>}, {pipeline_mode = #tpu.pipeline_mode<synchronous>, transform_indices = @transform_1, window_bounds = array<i64: 8, 128>}, {pipeline_mode = #tpu.pipeline_mode<synchronous>, transform_indices = @transform_2, window_bounds = array<i64: 1, 128>}, {transform_indices = @transform_3, window_bounds = array<i64: 128, 128>}, {transform_indices = @transform_4, window_bounds = array<i64: 1, 128>}, {transform_indices = @transform_5, window_bounds = array<i64: 8, 128>}]} {
    %c0 = arith.constant 0 : index
    %c0_0 = arith.constant 0 : index
    %0 = vector.load %arg2[%c0, %c0_0] : memref<8x8xf32, #tpu.memory_space<vmem>>, vector<8x8xf32>
    %1 = arith.truncf %0 : vector<8x8xf32> to vector<8x8xbf16>
    %c0_1 = arith.constant 0 : index
    %c0_2 = arith.constant 0 : index
    %2 = vector.load %arg3[%c0_1, %c0_2] : memref<8x128xbf16, #tpu.memory_space<vmem>>, vector<8x128xbf16>
    %cst = arith.constant dense<0.000000e+00> : vector<8x128xf32>
    %3 = tpu.matmul %1, %2, %cst {dimension_numbers = #tpu.dot_dimension_numbers<[1], [0], [0], [1], [0, 0, 1, 1], [], []>} : vector<8x8xbf16>, vector<8x128xbf16>, vector<8x128xf32> -> vector<8x128xf32>
    %c0_3 = arith.constant 0 : index
    %c0_4 = arith.constant 0 : index
    %4 = vector.load %arg4[%c0_3, %c0_4] : memref<1x128xf32, #tpu.memory_space<vmem>>, vector<1x128xf32>
    %5 = vector.broadcast %4 : vector<1x128xf32> to vector<8x128xf32>
    %6 = arith.addf %3, %5 : vector<8x128xf32>
    %cst_5 = arith.constant 0.000000e+00 : f32
    %7 = vector.broadcast %cst_5 : f32 to vector<8x128xf32>
    %8 = arith.maximumf %6, %7 : vector<8x128xf32>
    %9 = arith.truncf %8 : vector<8x128xf32> to vector<8x128xbf16>
    %c0_6 = arith.constant 0 : index
    %c0_7 = arith.constant 0 : index
    %10 = vector.load %arg5[%c0_6, %c0_7] : memref<128x128xbf16, #tpu.memory_space<vmem>>, vector<128x128xbf16>
    %cst_8 = arith.constant dense<0.000000e+00> : vector<8x128xf32>
    %11 = tpu.matmul %9, %10, %cst_8 {dimension_numbers = #tpu.dot_dimension_numbers<[1], [0], [0], [1], [0, 0, 1, 1], [], []>} : vector<8x128xbf16>, vector<128x128xbf16>, vector<8x128xf32> -> vector<8x128xf32>
    %c0_9 = arith.constant 0 : index
    %c0_10 = arith.constant 0 : index
    %12 = vector.load %arg6[%c0_9, %c0_10] : memref<1x128xf32, #tpu.memory_space<vmem>>, vector<1x128xf32>
    %13 = vector.broadcast %12 : vector<1x128xf32> to vector<8x128xf32>
    %14 = arith.addf %11, %13 : vector<8x128xf32>
    %c0_11 = arith.constant 0 : index
    %c0_12 = arith.constant 0 : index
    %15 = vector.load %arg7[%c0_11, %c0_12] : memref<8x128xf32, #tpu.memory_space<vmem>>, vector<8x128xf32>
    tpu.vector_store %arg7[%c0_11, %c0_12], %14 {strides = array<i32>} : memref<8x128xf32, #tpu.memory_space<vmem>>, vector<8x128xf32>,
    return
  }
  func.func @transform_0(%arg0: i32, %arg1: i32) -> (i32, i32) {
    %c0_i32 = arith.constant 0 : i32
    %c0_i32_0 = arith.constant 0 : i32
    return %arg0, %c0_i32 : i32, i32
  }
  func.func @transform_1(%arg0: i32, %arg1: i32) -> (i32, i32) {
    %c0_i32 = arith.constant 0 : i32
    %c0_i32_0 = arith.constant 0 : i32
    %c0_i32_1 = arith.constant 0 : i32
    return %c0_i32, %c0_i32_0 : i32, i32
  }
  func.func @transform_2(%arg0: i32, %arg1: i32) -> (i32, i32) {
    %c0_i32 = arith.constant 0 : i32
    %c0_i32_0 = arith.constant 0 : i32
    %c0_i32_1 = arith.constant 0 : i32
    return %c0_i32, %c0_i32_0 : i32, i32
  }
  func.func @transform_3(%arg0: i32, %arg1: i32) -> (i32, i32) {
    %c0_i32 = arith.constant 0 : i32
    %c0_i32_0 = arith.constant 0 : i32
    return %c0_i32, %arg1 : i32, i32
  }
  func.func @transform_4(%arg0: i32, %arg1: i32) -> (i32, i32) {
    %c0_i32 = arith.constant 0 : i32
    %c0_i32_0 = arith.constant 0 : i32
    return %c0_i32, %arg1 : i32, i32
  }
  func.func @transform_5(%arg0: i32, %arg1: i32) -> (i32, i32) {
    %c0_i32 = arith.constant 0 : i32
    return %arg0, %arg1 : i32, i32
  }
}

</mosaic_0001>

<llo_original>
// kernel: decoder_forward.1
$region0: #{decoder_forward.1}
  #allocation0 [shape = 'u32[]', space=smem, size = 0x4, offset = 0x4, fixed_abs, tag = 'smem constant byte address 0x4 - core index']
  #allocation1 [shape = 'u32[72,128]{1,0:T(1,128)}', space=vmem, size = 0x9000, scoped, tag = 'internal scratch']
  %s0 = inlined_call_operand.hbm [shape: f32[8,8], index: 0, kind: input, shape index: {}]
  %s1 = inlined_call_operand.hbm [shape: bf16[8,128], index: 1, kind: input, shape index: {}]
  %s2 = inlined_call_operand.vmem [shape: f32[1,128], index: 2, kind: input, shape index: {}]
  %s3 = inlined_call_operand.hbm [shape: bf16[128,128], index: 3, kind: input, shape index: {}]
  %s4 = inlined_call_operand.vmem [shape: f32[1,128], index: 4, kind: input, shape index: {}]
  %s5 = inlined_call_operand.hbm [shape: f32[8,128], index: 5, kind: output, shape index: {}]
  %s6 = sld [smem:[#allocation0]]
  $region42: #{decoder_forward.1} parent=0
    _
  %s8 = ssub.s32 1, %s6
  %s9 = scalar_select 0, %s8, %s6
  $region1: #{decoder_forward.1} parent=0
    #allocation2 [shape = 'u8[4096]{0}', space=vmem, size = 0x1000, scoped, tag = 'input window, operand 0, single buffered']
    #allocation3 [shape = 's32[1]{0}', space=sflag, size = 0x4, scoped, tag = 'scoped memory for decoder_forward.1']
    #allocation4 [shape = 's32[1]{0}', space=sflag, size = 0x4, scoped, tag = 'scoped memory for decoder_forward.1']
    #allocation5 [shape = 'u8[2048]{0}', space=vmem, size = 0x800, scoped, tag = 'input window, operand 1, single buffered']
    #allocation6 [shape = 's32[1]{0}', space=sflag, size = 0x4, scoped, tag = 'scoped memory for decoder_forward.1']
    #allocation7 [shape = 'u8[32768]{0}', space=vmem, size = 0x8000, scoped, tag = 'input window, operand 3, single buffered']
    #allocation8 [shape = 'u8[4096]{0}', space=vmem, size = 0x1000, scoped, tag = 'output window, operand 0, single buffered']
    %10 = vsyncpa [#allocation3], 0
    %11 = vsyncpa [#allocation6], 0
    %12 = vsyncpa [#allocation4], 0
    // Predicated region
    $region2: #{decoder_forward.1} parent=1 // pred_check
      _
    $region3: #{decoder_forward.1} parent=1 // pred_check_branch
      %14 = sbr.rel (0) target = $region5
    $region4: #{decoder_forward.1} parent=1 // pred_region
      %16 = vsyncadd [#allocation3], 0
      %s18 = sshll.u32 %s0, 4
      %s19 = int_to_ptr.hbm [resolvable:$true] %s18
      %s20 = sshll.u32 [#allocation2], 4
      %s21 = int_to_ptr.vmem [resolvable:$true] %s20
      %23 = dma.hbm_to_vmem [thread:$0]  %s19, 128, %s21, [#allocation3]
    $region5: #{decoder_forward.1} parent=1 // pred_fallthru
      _
    // Predicated region
    $region6: #{decoder_forward.1} parent=1 // pred_check
      _
    $region7: #{decoder_forward.1} parent=1 // pred_check_branch
      %25 = sbr.rel (0) target = $region9
    $region8: #{decoder_forward.1} parent=1 // pred_region
      %27 = vsyncadd [#allocation6], 0
      %s29 = sshll.u32 %s1, 4
      %s30 = int_to_ptr.hbm [resolvable:$true] %s29
      %s31 = sshll.u32 [#allocation5], 4
      %s32 = int_to_ptr.vmem [resolvable:$true] %s31
      %34 = dma.hbm_to_vmem [thread:$0]  %s30, 64, %s32, [#allocation6]
    $region9: #{decoder_forward.1} parent=1 // pred_fallthru
      _
    // Predicated region
    $region10: #{decoder_forward.1} parent=1 // pred_check
      _
    $region11: #{decoder_forward.1} parent=1 // pred_check_branch
      %36 = sbr.rel (0) target = $region13
    $region12: #{decoder_forward.1} parent=1 // pred_region
      _
    $region13: #{decoder_forward.1} parent=1 // pred_fallthru
      _
    // Predicated region
    $region14: #{decoder_forward.1} parent=1 // pred_check
      _
    $region15: #{decoder_forward.1} parent=1 // pred_check_branch
      %38 = sbr.rel (0) target = $region17
    $region16: #{decoder_forward.1} parent=1 // pred_region
      %40 = vsyncadd [#allocation6], 0
      %s41 = sshll.u32 %s3, 4
      %s42 = int_to_ptr.hbm [resolvable:$true] %s41
      %s43 = sshll.u32 [#allocation7], 4
      %s44 = int_to_ptr.vmem [resolvable:$true] %s43
      %49 = dma.hbm_to_vmem [thread:$0]  %s42, 1024, %s44, [#allocation6], 64, 64, 4
    $region17: #{decoder_forward.1} parent=1 // pred_fallthru
      _
    // Predicated region
    $region18: #{decoder_forward.1} parent=1 // pred_check
      _
    $region19: #{decoder_forward.1} parent=1 // pred_check_branch
      %51 = sbr.rel (0) target = $region21
    $region20: #{decoder_forward.1} parent=1 // pred_region
      _
    $region21: #{decoder_forward.1} parent=1 // pred_fallthru
      _
    // Predicated region
    $region22: #{decoder_forward.1} parent=1 // pred_check
      _
    $region23: #{decoder_forward.1} parent=1 // pred_check_branch
      %53 = sbr.rel (0) target = $region25
    $region24: #{decoder_forward.1} parent=1 // pred_region
      %55 = dma.done [#allocation3], 128
    $region25: #{decoder_forward.1} parent=1 // pred_fallthru
      _
    // Predicated region
    $region26: #{decoder_forward.1} parent=1 // pred_check
      _
    $region27: #{decoder_forward.1} parent=1 // pred_check_branch
      %57 = sbr.rel (0) target = $region29
    $region28: #{decoder_forward.1} parent=1 // pred_region
      %59 = dma.done [#allocation6], 64
    $region29: #{decoder_forward.1} parent=1 // pred_fallthru
      _
    // Predicated region
    $region30: #{decoder_forward.1} parent=1 // pred_check
      _
    $region31: #{decoder_forward.1} parent=1 // pred_check_branch
      %61 = sbr.rel (0) target = $region33
    $region32: #{decoder_forward.1} parent=1 // pred_region
      %63 = dma.done [#allocation6], 1024
    $region33: #{decoder_forward.1} parent=1 // pred_fallthru
      _
    %v65 = vld [vmem:[#allocation2] sm:$0xff]
    %v66 = vpack.c.bf16 %v65, %v65
    %v67 = vld [vmem:[#allocation5] sm:$0xf]
    %v68 = vld [vmem:[%s2] sm:$0x1]
    %v70 = vperm.slane %v68, 0
    %vm72 = vcmask 64512
    %v74 = vsel %vm72, %v66, 0
    %vm76 = vcmask 1043456
    %v78 = vsel %vm76, %v67, 0
    %80 = vmatpush.bf16.msra.mxu0 0
    %81 = vmatpush.bf16.msra.mxu0 0
    %82 = vmatpush.bf16.msra.mxu0 0
    %83 = vmatpush.bf16.msra.mxu0 0
    %84 = vmatpush.bf16.msra.mxu0 0
    %85 = vmatpush.bf16.msra.mxu0 0
    %86 = vmatpush.bf16.msra.mxu0 0
    %87 = vmatpush.bf16.msra.mxu0 %v78
    %88 = vmatmul.bf16.gmra.mxu0 %v74
    %v89 = vpop.f32.mrf.mxu0
    %v90 = vadd.f32 %v70, %v89
    %v91 = vpop.f32.mrf.mxu0
    %92 = vdwg.mxu0
    %v93 = vmax.f32 %v90, 0.0
    %v94 = vpack.c.bf16 %v93, %v93
    %v95 = vld [vmem:[#allocation7] sm:$0xf]
    %v96 = vld [vmem:[#allocation7 + $0x4] sm:$0xf]
    %v97 = vld [vmem:[#allocation7 + $0x8] sm:$0xf]
    %v98 = vld [vmem:[#allocation7 + $0xc] sm:$0xf]
    %v99 = vld [vmem:[#allocation7 + $0x10] sm:$0xf]
    %v100 = vld [vmem:[#allocation7 + $0x14] sm:$0xf]
    %v101 = vld [vmem:[#allocation7 + $0x18] sm:$0xf]
    %v102 = vld [vmem:[#allocation7 + $0x1c] sm:$0xf]
    %v103 = vld [vmem:[#allocation7 + $0x20] sm:$0xf]
    %v104 = vld [vmem:[#allocation7 + $0x24] sm:$0xf]
    %v105 = vld [vmem:[#allocation7 + $0x28] sm:$0xf]
    %v106 = vld [vmem:[#allocation7 + $0x2c] sm:$0xf]
    %v107 = vld [vmem:[#allocation7 + $0x30] sm:$0xf]
    %v108 = vld [vmem:[#allocation7 + $0x34] sm:$0xf]
    %v109 = vld [vmem:[#allocation7 + $0x38] sm:$0xf]
    %v110 = vld [vmem:[#allocation7 + $0x3c] sm:$0xf]
    %v111 = vld [vmem:[%s4] sm:$0x1]
    %v113 = vperm.slane %v111, 0
    %v131 = vunpack.c.l.b16 %v95
    %v132 = vunpack.c.l.b16 %v96
    %v133 = vunpack.c.l.b16 %v97
    %v134 = vunpack.c.l.b16 %v98
    %v135 = vunpack.c.l.b16 %v99
    %v136 = vunpack.c.l.b16 %v100
    %v137 = vunpack.c.l.b16 %v101
    %v138 = vunpack.c.l.b16 %v102
    %v139 = vunpack.c.l.b16 %v103
    %v140 = vunpack.c.l.b16 %v104
    %v141 = vunpack.c.l.b16 %v105
    %v142 = vunpack.c.l.b16 %v106
    %v143 = vunpack.c.l.b16 %v107
    %v144 = vunpack.c.l.b16 %v108
    %v145 = vunpack.c.l.b16 %v109
    %v146 = vunpack.c.l.b16 %v110
    %v147 = vpack.c.b16 %v132, %v131
    %v148 = vpack.c.b16 %v134, %v133
    %v149 = vpack.c.b16 %v136, %v135
    %v150 = vpack.c.b16 %v138, %v137
    %v151 = vpack.c.b16 %v140, %v139
    %v152 = vpack.c.b16 %v142, %v141
    %v153 = vpack.c.b16 %v144, %v143
    %v154 = vpack.c.b16 %v146, %v145
    %163 = vmatpush.bf16.msra.mxu0 %v154
    %164 = vmatpush.bf16.msra.mxu0 %v153
    %165 = vmatpush.bf16.msra.mxu0 %v152
    %166 = vmatpush.bf16.msra.mxu0 %v151
    %167 = vmatpush.bf16.msra.mxu0 %v150
    %168 = vmatpush.bf16.msra.mxu0 %v149
    %169 = vmatpush.bf16.msra.mxu0 %v148
    %170 = vmatpush.bf16.msra.mxu0 %v147
    %171 = vmatmul.bf16.gmra.mxu0 %v94
    %v172 = vpop.f32.mrf.mxu0
    %v173 = vadd.f32 %v113, %v172
    %v174 = vpop.f32.mrf.mxu0
    %175 = vdwg.mxu0
    %176 = vst [vmem:[#allocation8] sm:$0xff] %v173
    // Predicated region
    $region34: #{decoder_forward.1} parent=1 // pred_check
      _
    $region35: #{decoder_forward.1} parent=1 // pred_check_branch
      %178 = sbr.rel (0) target = $region37
    $region36: #{decoder_forward.1} parent=1 // pred_region
      %180 = vsyncadd [#allocation4], 0
      %s182 = sshll.u32 [#allocation8], 4
      %s183 = int_to_ptr.vmem [resolvable:$true] %s182
      %s184 = sshll.u32 %s5, 4
      %s185 = int_to_ptr.hbm [resolvable:$true] %s184
      %187 = dma.vmem_to_hbm [thread:$0]  %s183, 128, %s185, [#allocation4]
    $region37: #{decoder_forward.1} parent=1 // pred_fallthru
      _
    // Predicated region
    $region38: #{decoder_forward.1} parent=1 // pred_check
      _
    $region39: #{decoder_forward.1} parent=1 // pred_check_branch
      %189 = sbr.rel (0) target = $region41
    $region40: #{decoder_forward.1} parent=1 // pred_region
      %191 = dma.done [#allocation4], 128
    $region41: #{decoder_forward.1} parent=1 // pred_fallthru
      _
    %192 = vsyncpa [#allocation3], 1
    %193 = vsyncpa [#allocation6], 1
    %194 = vsyncpa [#allocation4], 1

</llo_original>
